<compile_context>
chip_gen: v6e
topology: v6e:2x2x1
jax: 0.10.0
libtpu: 0.0.40
codegen_flags: <defaults>
</compile_context>

<pallas_src>
import jax
import jax.numpy as jnp
from jax import lax
from jax.experimental import pallas as pl
from jax.experimental.pallas import tpu as pltpu
import numpy as np


def _round_up(x, m):
    return (x + m - 1) // m * m


def _convblock_kernel(p_ref, w_ref, o_ref):
    # p_ref: (1, 9*Cin, H*W)  im2col patches for one batch element
    # w_ref: (ct, 9*Cin)      weight tile (ct output channels)
    # o_ref: (1, ct, H*W)     output tile (lane axis = H*W -> lane dense)

    # Single im2col matmul on the MXU, f32 accumulation.
    acc = jnp.dot(w_ref[...], p_ref[0],
                  preferred_element_type=jnp.float32)            # (ct, H*W)

    hw = acc.shape[1]
    inv_hw = jnp.float32(1.0 / hw)

    # InstanceNorm2d (affine=False, eps=1e-5): one-pass per-channel stats
    # over H*W (biased variance), f32, clamped to guard cancellation.
    s1 = jnp.sum(acc, axis=1, keepdims=True)
    s2 = jnp.sum(acc * acc, axis=1, keepdims=True)
    mean = s1 * inv_hw
    var = jnp.maximum(s2 * inv_hw - mean * mean, 0.0)
    y = (acc - mean) * lax.rsqrt(var + 1e-5)

    # LeakyReLU, default negative_slope = 0.01.
    y = jnp.where(y >= 0, y, 0.01 * y)

    o_ref[0] = y.astype(o_ref.dtype)


def conv_block(x_nchw, weight_oihw, bias=None):
    """Forward of ConvBlock.  x: (N, Cin, H, W), weight: (Cout, Cin, 3, 3).

    `bias` is accepted for API parity but unused: a per-channel constant is
    exactly cancelled by InstanceNorm2d(affine=False).
    """
    del bias
    N, Cin, H, W = x_nchw.shape
    Cout = weight_oihw.shape[0]
    HW = H * W
    K9 = 9 * Cin

    # ---- XLA glue (layout only): reflection pad + im2col, staying NCHW -----
    xp = jnp.pad(x_nchw, ((0, 0), (0, 0), (1, 1), (1, 1)), mode="reflect")
    taps = [lax.slice(xp, (0, 0, ky, kx), (N, Cin, ky + H, kx + W))
            for ky in range(3) for kx in range(3)]                # 9 x (N,Cin,H,W)
    patches = jnp.stack(taps, axis=1).reshape(N, K9, HW)          # (N, 9*Cin, H*W)

    # Weights -> (Cout, 9*Cin), tap-major then Cin, matching `patches`.
    w2 = jnp.transpose(weight_oihw, (0, 2, 3, 1)).reshape(Cout, K9)

    # Tile the output-channel axis (InstanceNorm is per-channel, so channel
    # tiling is exact).  Pad Cout so each tile is sublane-aligned; zero-weight
    # padded channels normalize to 0 and are sliced off below.
    ct = min(128, _round_up(Cout, 8))
    Cp = _round_up(Cout, ct)
    if Cp != Cout:
        w2 = jnp.pad(w2, ((0, Cp - Cout), (0, 0)))
    n_ct = Cp // ct

    out = pl.pallas_call(
        _convblock_kernel,
        out_shape=jax.ShapeDtypeStruct((N, Cp, HW), x_nchw.dtype),
        grid_spec=pltpu.PrefetchScalarGridSpec(
            num_scalar_prefetch=0,
            grid=(N, n_ct),
            in_specs=[
                pl.BlockSpec((1, K9, HW), lambda n, c: (n, 0, 0)),
                pl.BlockSpec((ct, K9), lambda n, c: (c, 0)),
            ],
            out_specs=pl.BlockSpec((1, ct, HW), lambda n, c: (n, c, 0)),
        ),
        compiler_params=pltpu.CompilerParams(
            dimension_semantics=("parallel", "parallel")),
    )(patches, w2)

    if Cp != Cout:
        out = out[:, :Cout, :]
    return out.reshape(N, Cout, H, W)


def conv_block_reference(x_nchw, weight_oihw, bias):
    """Pure-JAX reference (includes the conv bias, exactly as the PyTorch module)."""
    xp = jnp.pad(x_nchw, ((0, 0), (0, 0), (1, 1), (1, 1)), mode="reflect")
    y = lax.conv_general_dilated(
        xp.astype(jnp.float32), weight_oihw.astype(jnp.float32),
        window_strides=(1, 1), padding="VALID",
        dimension_numbers=("NCHW", "OIHW", "NCHW"))
    y = y + bias.astype(jnp.float32)[None, :, None, None]
    mean = jnp.mean(y, axis=(2, 3), keepdims=True)
    var = jnp.mean((y - mean) ** 2, axis=(2, 3), keepdims=True)
    y = (y - mean) * lax.rsqrt(var + 1e-5)
    y = jnp.where(y >= 0, y, 0.01 * y)
    return y.astype(x_nchw.dtype)


if __name__ == "__main__":
    # Small deterministic setup: N=2, c_in=4, c_out=8, 16x16 spatial.
    N, C_IN, C_OUT, H, W = 2, 4, 8, 16, 16

    key = jax.random.PRNGKey(0)
    kx, kw, kb = jax.random.split(key, 3)

    x = jax.random.normal(kx, (N, C_IN, H, W), dtype=jnp.float32)
    fan_in = C_IN * 3 * 3
    bound = 1.0 / np.sqrt(fan_in)
    weight = jax.random.uniform(kw, (C_OUT, C_IN, 3, 3), jnp.float32,
                                minval=-bound, maxval=bound)
    bias = jax.random.uniform(kb, (C_OUT,), jnp.float32,
                              minval=-bound, maxval=bound)

    out = conv_block(x, weight, bias)
    out = jax.block_until_ready(out)

    ref = jax.block_until_ready(conv_block_reference(x, weight, bias))
    np.testing.assert_allclose(np.asarray(out), np.asarray(ref),
                               rtol=1e-3, atol=1e-4)

    print("KERNEL_OK")
</pallas_src>

<mosaic_0001>
module attributes {stable_mosaic.version = 11 : i64} {
  func.func @_convblock_kernel(%arg0: i32, %arg1: i32, %arg2: memref<1x36x256xf32, #tpu.memory_space<vmem>>, %arg3: memref<8x36xf32, #tpu.memory_space<vmem>>, %arg4: memref<1x8x256xf32, #tpu.memory_space<vmem>>) attributes {dimension_semantics = [#tpu.dimension_semantics<parallel>, #tpu.dimension_semantics<parallel>], iteration_bounds = array<i64: 2, 1>, scalar_prefetch = 0 : i64, scratch_operands = 0 : i64, tpu.core_type = #tpu.core_type<tc>, window_params = [{transform_indices = @transform_0, window_bounds = array<i64: 1, 36, 256>}, {transform_indices = @transform_1, window_bounds = array<i64: 8, 36>}, {transform_indices = @transform_2, window_bounds = array<i64: 1, 8, 256>}]} {
    %c0 = arith.constant 0 : index
    %c0_0 = arith.constant 0 : index
    %0 = vector.load %arg3[%c0, %c0_0] : memref<8x36xf32, #tpu.memory_space<vmem>>, vector<8x36xf32>
    %c0_1 = arith.constant 0 : index
    %c0_2 = arith.constant 0 : index
    %c0_3 = arith.constant 0 : index
    %1 = vector.load %arg2[%c0_1, %c0_2, %c0_3] : memref<1x36x256xf32, #tpu.memory_space<vmem>>, vector<1x36x256xf32>
    %2 = vector.shape_cast %1 : vector<1x36x256xf32> to vector<36x256xf32>
    %cst = arith.constant dense<0.000000e+00> : vector<8x256xf32>
    %3 = tpu.matmul %0, %2, %cst {dimension_numbers = #tpu.dot_dimension_numbers<[1], [0], [0], [1], [0, 0, 1, 1], [], []>} : vector<8x36xf32>, vector<36x256xf32>, vector<8x256xf32> -> vector<8x256xf32>
    %cst_4 = arith.constant dense<0.000000e+00> : vector<8xf32>
    %4 = vector.multi_reduction <add>, %3, %cst_4 [1] : vector<8x256xf32> to vector<8xf32>
    %5 = vector.shape_cast %4 : vector<8xf32> to vector<8x1xf32>
    %6 = arith.mulf %3, %3 : vector<8x256xf32>
    %cst_5 = arith.constant dense<0.000000e+00> : vector<8xf32>
    %7 = vector.multi_reduction <add>, %6, %cst_5 [1] : vector<8x256xf32> to vector<8xf32>
    %8 = vector.shape_cast %7 : vector<8xf32> to vector<8x1xf32>
    %cst_6 = arith.constant 3.906250e-03 : f32
    %9 = vector.broadcast %cst_6 : f32 to vector<8x1xf32>
    %10 = arith.mulf %5, %9 : vector<8x1xf32>
    %cst_7 = arith.constant 3.906250e-03 : f32
    %11 = vector.broadcast %cst_7 : f32 to vector<8x1xf32>
    %12 = arith.mulf %8, %11 : vector<8x1xf32>
    %13 = arith.mulf %10, %10 : vector<8x1xf32>
    %14 = arith.subf %12, %13 : vector<8x1xf32>
    %cst_8 = arith.constant 0.000000e+00 : f32
    %15 = vector.broadcast %cst_8 : f32 to vector<8x1xf32>
    %16 = arith.maximumf %14, %15 : vector<8x1xf32>
    %17 = vector.broadcast %10 : vector<8x1xf32> to vector<8x256xf32>
    %18 = arith.subf %3, %17 : vector<8x256xf32>
    %cst_9 = arith.constant 9.99999974E-6 : f32
    %19 = vector.broadcast %cst_9 : f32 to vector<8x1xf32>
    %20 = arith.addf %16, %19 : vector<8x1xf32>
    %21 = math.rsqrt %20 : vector<8x1xf32>
    %22 = vector.broadcast %21 : vector<8x1xf32> to vector<8x256xf32>
    %23 = arith.mulf %18, %22 : vector<8x256xf32>
    %cst_10 = arith.constant 0.000000e+00 : f32
    %24 = vector.broadcast %cst_10 : f32 to vector<8x256xf32>
    %25 = arith.cmpf oge, %23, %24 : vector<8x256xf32>
    %cst_11 = arith.constant 0.00999999977 : f32
    %26 = vector.broadcast %cst_11 : f32 to vector<8x256xf32>
    %27 = arith.mulf %26, %23 : vector<8x256xf32>
    %28 = arith.select %25, %23, %27 : vector<8x256xi1>, vector<8x256xf32>
    %c0_12 = arith.constant 0 : index
    %c0_13 = arith.constant 0 : index
    %c0_14 = arith.constant 0 : index
    %29 = vector.load %arg4[%c0_12, %c0_13, %c0_14] : memref<1x8x256xf32, #tpu.memory_space<vmem>>, vector<1x8x256xf32>
    %30 = vector.shape_cast %29 : vector<1x8x256xf32> to vector<8x256xf32>
    %31 = vector.shape_cast %28 : vector<8x256xf32> to vector<1x8x256xf32>
    tpu.vector_store %arg4[%c0_12, %c0_13, %c0_14], %31 {strides = array<i32>} : memref<1x8x256xf32, #tpu.memory_space<vmem>>, vector<1x8x256xf32>,
    return
  }
  func.func @transform_0(%arg0: i32, %arg1: i32) -> (i32, i32, i32) {
    %c0_i32 = arith.constant 0 : i32
    %c0_i32_0 = arith.constant 0 : i32
    %c0_i32_1 = arith.constant 0 : i32
    return %arg0, %c0_i32, %c0_i32_0 : i32, i32, i32
  }
  func.func @transform_1(%arg0: i32, %arg1: i32) -> (i32, i32) {
    %c0_i32 = arith.constant 0 : i32
    %c0_i32_0 = arith.constant 0 : i32
    return %arg1, %c0_i32 : i32, i32
  }
  func.func @transform_2(%arg0: i32, %arg1: i32) -> (i32, i32, i32) {
    %c0_i32 = arith.constant 0 : i32
    %c0_i32_0 = arith.constant 0 : i32
    return %arg0, %arg1, %c0_i32 : i32, i32, i32
  }
}

</mosaic_0001>

<llo_original>
// kernel: tpu_custom_call.1
$region0: #{tpu_custom_call.1}
  #allocation0 [shape = 'u32[]', space=smem, size = 0x4, offset = 0x4, fixed_abs, tag = 'smem constant byte address 0x4 - core index']
  #allocation1 [shape = 'u32[144,128]{1,0:T(1,128)}', space=vmem, size = 0x12000, scoped, tag = 'internal scratch']
  %s0 = inlined_call_operand.vmem [shape: f32[2,36,256], index: 0, kind: input, shape index: {}]
  %s1 = inlined_call_operand.vmem [shape: f32[8,36], index: 1, kind: input, shape index: {}]
  %s2 = inlined_call_operand.hbm [shape: f32[2,8,256], index: 2, kind: output, shape index: {}]
  %s3 = sld [smem:[#allocation0]]
  $region41: #{tpu_custom_call.1} parent=0
    _
  %s5 = ssub.s32 1, %s3
  %s6 = scalar_select 0, %s5, %s3
  $region1: #{tpu_custom_call.1} parent=0
    #allocation2 [shape = 'u8[16384]{0}', space=vmem, size = 0x4000, scoped, tag = 'output window, operand 0']
    #allocation3 [shape = 's32[2]{0}', space=sflag, size = 0x8, scoped, tag = 'scoped memory for tpu_custom_call.1']
    %7 = vsyncpa [#allocation3], 0
    %s8 = scalar_lea.sflag [#allocation3], 1
    %9 = vsyncpa %s8, 0
    loop: start=0, step=1, limit=4
    $region2: #{tpu_custom_call.1} parent=1 // loop_pre_header
      _
    $region3: #{tpu_custom_call.1} parent=1 // loop_header
      %s11 = sphi 0, %s15
      %p12 = scmp.ge.s32.totalorder %s11, 4
      %s18 = sphi 0, %s30
      %s19 = sphi 0, %s26
      %s20 = sphi 0, %s18
      %s21 = sphi 0, %s19
      %s22 = sphi 0, %s20
      %s23 = sphi 0, %s21
      %s33 = sphi 0, %s35
      %s36 = sphi 0, %s33
      %s37 = sphi 0, %s36
      %s53 = sphi 0, %s37
      %s59 = sphi 0, %s61
      %s62 = sphi 0, %s59
      %s63 = sphi 0, %s62
      %s79 = sphi 0, %s63
      %s87 = sphi 0, %s89
      %s90 = sphi 0, %s87
      %s91 = sphi 0, %s90
      %s107 = sphi 0, %s91
    $region4: #{tpu_custom_call.1} parent=1 // loop_header_branch
      %14 = sbr.rel (%p12) target = $region8
    $region5: #{tpu_custom_call.1} parent=1 // loop_body
      %s16 = ssub.s32 %s11, 1
      %s17 = ssub.s32 %s11, 2
      %s24 = sadd.s32 1, %s19
      %p25 = scmp.ge.s32.totalorder %s24, 1
      %s26 = scalar_select %p25, 0, %s24
      %s27 = sadd.s32 1, %s18
      %s28 = scalar_select %p25, %s27, %s18
      %p29 = scmp.ge.s32.totalorder %s28, 2
      %s30 = scalar_select %p29, 0, %s28
      %s31 = ssub.s32 %s18, %s30
      %p32 = scmp.eq.s32.totalorder %s31, 0
      %s34 = sadd.s32 %s33, 1
      %s35 = scalar_select %p32, %s33, %s34
      %p38 = pneg %p32
      %p39 = scmp.eq.s32.totalorder %s11, 1
      %p40 = por %p38, %p39
      %p41 = scmp.ne.s32.totalorder %s33, %s36
      %p42 = scmp.eq.s32.totalorder %s11, 0
      %p43 = por %p41, %p42
      %p44 = scmp.ne.s32.totalorder %s33, %s36
      %p45 = scmp.eq.s32.totalorder %s16, 1
      %p46 = por %p44, %p45
      %p47 = scmp.ne.s32.totalorder %s36, %s37
      %p48 = scmp.eq.s32.totalorder %s16, 0
      %p49 = por %p47, %p48
      %p50 = scmp.ne.s32.totalorder %s36, %s37
      %p51 = scmp.eq.s32.totalorder %s17, 1
      %p52 = por %p50, %p51
      %p54 = scmp.ne.s32.totalorder %s37, %s53
      %p55 = scmp.eq.s32.totalorder %s17, 0
      %p56 = por %p54, %p55
      %s57 = ssub.s32 %s19, %s26
      %p58 = scmp.eq.s32.totalorder %s57, 0
      %s60 = sadd.s32 %s59, 1
      %s61 = scalar_select %p58, %s59, %s60
      %p64 = pneg %p58
      %p65 = scmp.eq.s32.totalorder %s11, 1
      %p66 = por %p64, %p65
      %p67 = scmp.ne.s32.totalorder %s59, %s62
      %p68 = scmp.eq.s32.totalorder %s11, 0
      %p69 = por %p67, %p68
      %p70 = scmp.ne.s32.totalorder %s59, %s62
      %p71 = scmp.eq.s32.totalorder %s16, 1
      %p72 = por %p70, %p71
      %p73 = scmp.ne.s32.totalorder %s62, %s63
      %p74 = scmp.eq.s32.totalorder %s16, 0
      %p75 = por %p73, %p74
      %p76 = scmp.ne.s32.totalorder %s62, %s63
      %p77 = scmp.eq.s32.totalorder %s17, 1
      %p78 = por %p76, %p77
      %p80 = scmp.ne.s32.totalorder %s63, %s79
      %p81 = scmp.eq.s32.totalorder %s17, 0
      %p82 = por %p80, %p81
      %s83 = ssub.s32 %s18, %s30
      %s84 = ssub.s32 %s19, %s26
      %s85 = sor.u32 %s83, %s84
      %p86 = scmp.eq.s32.totalorder %s85, 0
      %s88 = sadd.s32 %s87, 1
      %s89 = scalar_select %p86, %s87, %s88
      %p92 = pneg %p86
      %p93 = scmp.eq.s32.totalorder %s11, 1
      %p94 = por %p92, %p93
      %p95 = scmp.ne.s32.totalorder %s87, %s90
      %p96 = scmp.eq.s32.totalorder %s11, 0
      %p97 = por %p95, %p96
      %p98 = scmp.ne.s32.totalorder %s87, %s90
      %p99 = scmp.eq.s32.totalorder %s16, 1
      %p100 = por %p98, %p99
      %p101 = scmp.ne.s32.totalorder %s90, %s91
      %p102 = scmp.eq.s32.totalorder %s16, 0
      %p103 = por %p101, %p102
      %p104 = scmp.ne.s32.totalorder %s90, %s91
      %p105 = scmp.eq.s32.totalorder %s17, 1
      %p106 = por %p104, %p105
      %p108 = scmp.ne.s32.totalorder %s91, %s107
      %p109 = scmp.eq.s32.totalorder %s17, 0
      %p110 = por %p108, %p109
      %p111 = scmp.le.s32.totalorder 1, %s11
      %p112 = scmp.lt.s32.totalorder %s11, 3
      %p113 = pnand %p111, %p112
      %p114 = pneg %p113
      // Predicated region
      $region9: #{tpu_custom_call.1} parent=5 // pred_check
        _
      $region10: #{tpu_custom_call.1} parent=5 // pred_check_branch
        %116 = sbr.rel (%p113) target = $region12
      $region11: #{tpu_custom_call.1} parent=5 // pred_region
        %s117 = ssub.s32 %s11, 1
        // Predicated region
        $region13: #{tpu_custom_call.1} parent=11 // pred_check
          %p118 = pneg %p75
        $region14: #{tpu_custom_call.1} parent=11 // pred_check_branch
          %120 = sbr.rel (%p118) target = $region16
        $region15: #{tpu_custom_call.1} parent=11 // pred_region
          %p121 = scmp.lt.s32.totalorder %s21, 0
          %s122 = scalar_select %p121, %s21, 0
          %s123 = smul.addr %s122, 8
          %s124 = scalar_lea.vmem %s1, %s123
        $region16: #{tpu_custom_call.1} parent=11 // pred_fallthru
          _
      $region12: #{tpu_custom_call.1} parent=5 // pred_fallthru
        _
      %p125 = scmp.lt.s32.totalorder %s11, 2
      // Predicated region
      $region17: #{tpu_custom_call.1} parent=5 // pred_check
        %p126 = pneg %p125
      $region18: #{tpu_custom_call.1} parent=5 // pred_check_branch
        %128 = sbr.rel (%p126) target = $region20
      $region19: #{tpu_custom_call.1} parent=5 // pred_region
        // Predicated region
        $region21: #{tpu_custom_call.1} parent=19 // pred_check
          %p129 = pneg %p43
        $region22: #{tpu_custom_call.1} parent=19 // pred_check_branch
          %131 = sbr.rel (%p129) target = $region24
        $region23: #{tpu_custom_call.1} parent=19 // pred_region
          %p132 = scmp.lt.s32.totalorder %s18, 1
          %s133 = scalar_select %p132, %s18, 1
          %s134 = smul.addr %s133, 10
          %s135 = smul.addr %s134, 8
          %s136 = scalar_lea.vmem %s0, %s135
        $region24: #{tpu_custom_call.1} parent=19 // pred_fallthru
          _
      $region20: #{tpu_custom_call.1} parent=5 // pred_fallthru
        _
      %p137 = scmp.le.s32.totalorder 1, %s11
      %p138 = scmp.lt.s32.totalorder %s11, 3
      %p139 = pnand %p137, %p138
      %p140 = pneg %p139
      // Predicated region
      $region25: #{tpu_custom_call.1} parent=5 // pred_check
        _
      $region26: #{tpu_custom_call.1} parent=5 // pred_check_branch
        %142 = sbr.rel (%p139) target = $region28
      $region27: #{tpu_custom_call.1} parent=5 // pred_region
        %s143 = ssub.s32 %s11, 1
        %p144 = scmp.lt.s32.totalorder %s20, 1
        %s145 = scalar_select %p144, %s20, 1
        %s146 = smul.addr %s145, 10
        %s147 = smul.addr %s146, 8
        %s148 = scalar_lea.vmem %s0, %s147
        %p149 = pneg %p49
        %p150 = pneg %p46
        %p151 = scmp.lt.s32.totalorder %s21, 0
        %s152 = scalar_select %p151, %s21, 0
        %s153 = smul.addr %s152, 8
        %s154 = scalar_lea.vmem %s1, %s153
        %p155 = pneg %p75
        %p156 = pneg %p72
        %p157 = pneg %p103
        %p158 = pneg %p100
        %s159 = sand.u32 %s90, 1
        %s160 = scalar_lea.sflag [#allocation3], %s159
        %s161 = sand.u32 %s90, 1
        %s162 = smul.addr %s161, 16
        %s163 = scalar_lea.vmem [#allocation2], %s162
        %p164 = scmp.lt.s32.totalorder %s20, 1
        %s165 = scalar_select %p164, %s20, 1
        %s166 = smul.addr %s165, 10
        %s167 = smul.addr %s166, 8
        %s168 = scalar_lea.vmem %s0, %s167
        %p169 = scmp.lt.s32.totalorder %s21, 0
        %s170 = scalar_select %p169, %s21, 0
        %s171 = smul.addr %s170, 8
        %s172 = scalar_lea.vmem %s1, %s171
        %v173 = vld [vmem:[%s172] sm:$0xff]
        %v174 = vld [vmem:[%s168] sm:$0xff]
        %v175 = vld [vmem:[%s168 + $0x8] sm:$0xff]
        %v176 = vld [vmem:[%s168 + $0x10] sm:$0xff]
        %v177 = vld [vmem:[%s168 + $0x18] sm:$0xff]
        %v178 = vld [vmem:[%s168 + $0x20] sm:$0xff]
        %v179 = vld [vmem:[%s168 + $0x28] sm:$0xff]
        %v180 = vld [vmem:[%s168 + $0x30] sm:$0xff]
        %v181 = vld [vmem:[%s168 + $0x38] sm:$0xff]
        %v182 = vld [vmem:[%s168 + $0x40] sm:$0xf]
        %v183 = vld [vmem:[%s168 + $0x48] sm:$0xf]
        %vm184 = vcmask 293888
        %v186 = vsel %vm184, %v173, 0
        %vm188 = vcmask 1043456
        %v190 = vsel %vm188, %v182, 0
        %v193 = vsel %vm188, %v183, 0
        %195 = vmatprep.subr.mxu0 0.0
        %196 = vmatpush1.msra.mxu0 0.0
        %197 = vmatprep.subr.mxu0 0.0
        %198 = vmatpush1.msra.mxu0 0.0
        %199 = vmatprep.subr.mxu0 0.0
        %200 = vmatpush1.msra.mxu0 0.0
        %201 = vmatprep.subr.mxu0 0.0
        %202 = vmatpush1.msra.mxu0 0.0
        %203 = vmatprep.subr.mxu0 0.0
        %204 = vmatpush1.msra.mxu0 0.0
        %205 = vmatprep.subr.mxu0 0.0
        %206 = vmatpush1.msra.mxu0 0.0
        %207 = vmatprep.subr.mxu0 0.0
        %208 = vmatpush1.msra.mxu0 0.0
        %209 = vmatprep.subr.mxu0 0.0
        %210 = vmatpush1.msra.mxu0 0.0
        %211 = vmatprep.subr.mxu0 0.0
        %212 = vmatpush1.msra.mxu0 0.0
        %213 = vmatprep.subr.mxu0 0.0
        %214 = vmatpush1.msra.mxu0 0.0
        %215 = vmatprep.subr.mxu0 0.0
        %216 = vmatpush1.msra.mxu0 0.0
        %217 = vmatprep.subr.mxu0 %v193
        %218 = vmatpush1.msra.mxu0 %v190
        %219 = vmatprep.subr.mxu0 %v181
        %220 = vmatpush1.msra.mxu0 %v180
        %221 = vmatprep.subr.mxu0 %v179
        %222 = vmatpush1.msra.mxu0 %v178
        %223 = vmatprep.subr.mxu0 %v177
        %224 = vmatpush1.msra.mxu0 %v176
        %225 = vmatprep.subr.mxu0 %v175
        %226 = vmatpush1.msra.mxu0 %v174
        %227 = vmatprep.subr.mxu0 0.0
        %228 = vmatpush2.msra.mxu0 0.0
        %229 = vmatprep.subr.mxu0 0.0
        %230 = vmatpush2.msra.mxu0 0.0
        %231 = vmatprep.subr.mxu0 0.0
        %232 = vmatpush2.msra.mxu0 0.0
        %233 = vmatprep.subr.mxu0 0.0
        %234 = vmatpush2.msra.mxu0 0.0
        %235 = vmatprep.subr.mxu0 0.0
        %236 = vmatpush2.msra.mxu0 0.0
        %237 = vmatprep.subr.mxu0 0.0
        %238 = vmatpush2.msra.mxu0 0.0
        %239 = vmatprep.subr.mxu0 0.0
        %240 = vmatpush2.msra.mxu0 0.0
        %241 = vmatprep.subr.mxu0 0.0
        %242 = vmatpush2.msra.mxu0 0.0
        %243 = vmatprep.subr.mxu0 0.0
        %244 = vmatpush2.msra.mxu0 0.0
        %245 = vmatprep.subr.mxu0 0.0
        %246 = vmatpush2.msra.mxu0 0.0
        %247 = vmatprep.subr.mxu0 0.0
        %248 = vmatpush2.msra.mxu0 0.0
        %249 = vmatprep.subr.mxu0 0.0
        %250 = vmatpush2.msra.mxu0 0.0
        %251 = vmatprep.subr.mxu0 0.0
        %252 = vmatpush2.msra.mxu0 0.0
        %253 = vmatprep.subr.mxu0 0.0
        %254 = vmatpush2.msra.mxu0 0.0
        %255 = vmatprep.subr.mxu0 0.0
        %256 = vmatpush2.msra.mxu0 0.0
        %257 = vmatprep.subr.mxu0 0.0
        %258 = vmatpush2.msra.mxu0 0.0
        %259 = vmatprep.mubr.f32.mxu0 0.0
        %260 = vmatmul.mubr.f32.gmra.mxu0 %v186
        %v261 = vpop.f32.mrf.mxu0
        %v262 = vadd.f32 0.0, %v261
        %v263 = vpop.f32.mrf.mxu0
        %v264 = vadd.f32 0.0, %v263
        %265 = vdwg.mxu0
        %v266 = vadd.f32 %v262, %v264
        %267 = vadd.xlane.f32.xlu0 %v266
        %v268 = vpop.xlane.xlu0 %267
        %v269 = vmul.f32 %v262, %v262
        %v270 = vmul.f32 %v264, %v264
        %v271 = vadd.f32 %v269, %v270
        %272 = vadd.xlane.f32.xlu0 %v271
        %v273 = vpop.xlane.xlu0 %272
        %v274 = vmul.f32 %v268, 0.00390625
        %v275 = vmul.f32 %v273, 0.00390625
        %v276 = vmul.f32 %v274, %v274
        %v277 = vsub.f32 %v275, %v276
        %v278 = vmax.f32 %v277, 0.0
        %v279 = vsub.f32 %v262, %v274
        %v280 = vsub.f32 %v264, %v274
        %v281 = vadd.f32 %v278, 1e-05
        %v282 = vrsqrt.pop %v281
        %v283 = vmul.f32 %v279, %v282
        %v284 = vmul.f32 %v280, %v282
        %vm285 = vcmp.ge.f32.partialorder %v283, 0.0
        %vm286 = vcmp.ge.f32.partialorder %v284, 0.0
        %v287 = vmul.f32 %v283, 0.01
        %v288 = vmul.f32 %v284, 0.01
        %v289 = vsel %vm285, %v283, %v287
        %v290 = vsel %vm286, %v284, %v288
        %291 = vst [vmem:[%s163] sm:$0xff] %v289
        %292 = vst [vmem:[%s163 + $0x8] sm:$0xff] %v290
        %s293 = sand.u32 %s90, 1
        %s294 = scalar_lea.sflag [#allocation3], %s293
        %s295 = sand.u32 %s90, 1
        %s296 = smul.addr %s295, 16
        %s297 = scalar_lea.vmem [#allocation2], %s296
        // Predicated region
        $region29: #{tpu_custom_call.1} parent=27 // pred_check
          %p298 = pneg %p100
        $region30: #{tpu_custom_call.1} parent=27 // pred_check_branch
          %300 = sbr.rel (%p298) target = $region32
        $region31: #{tpu_custom_call.1} parent=27 // pred_region
          %s302 = ssub.s32 256, 256
          %303 = vsyncadd %s294, %s302
          %s304 = smul.addr %s21, 2
          %s305 = smul.addr %s20, 2
          %s306 = sadd.s32 %s304, %s305
          %s307 = smul.addr %s306, 128
          %s308 = scalar_lea.hbm %s2, %s307
          %s310 = sshll.u32 %s297, 4
          %s311 = int_to_ptr.vmem [resolvable:$true] %s310
          %313 = dma.vmem_to_hbm [thread:$0]  %s311, 256, %s308, %s294
        $region32: #{tpu_custom_call.1} parent=27 // pred_fallthru
          _
      $region28: #{tpu_custom_call.1} parent=5 // pred_fallthru
        _
      %p314 = scmp.le.s32.totalorder 2, %s11
      // Predicated region
      $region33: #{tpu_custom_call.1} parent=5 // pred_check
        %p315 = pneg %p314
      $region34: #{tpu_custom_call.1} parent=5 // pred_check_branch
        %317 = sbr.rel (%p315) target = $region36
      $region35: #{tpu_custom_call.1} parent=5 // pred_region
        %s318 = ssub.s32 %s11, 2
        // Predicated region
        $region37: #{tpu_custom_call.1} parent=35 // pred_check
          %p319 = pneg %p106
        $region38: #{tpu_custom_call.1} parent=35 // pred_check_branch
          %321 = sbr.rel (%p319) target = $region40
        $region39: #{tpu_custom_call.1} parent=35 // pred_region
          %s322 = sand.u32 %s91, 1
          %s323 = scalar_lea.sflag [#allocation3], %s322
          %s324 = sand.u32 %s91, 1
          %s325 = smul.addr %s324, 16
          %s326 = scalar_lea.vmem [#allocation2], %s325
          %327 = dma.done %s323, 256
        $region40: #{tpu_custom_call.1} parent=35 // pred_fallthru
          _
      $region36: #{tpu_custom_call.1} parent=5 // pred_fallthru
        _
    $region6: #{tpu_custom_call.1} parent=1 // loop_footer
      %s15 = sadd.s32 1, %s11
    $region7: #{tpu_custom_call.1} parent=1 // loop_footer_branch
      %10 = sbr.rel target = $region3
    $region8: #{tpu_custom_call.1} parent=1 // loop_exit
      _
    %328 = vsyncpa [#allocation3], 1
    %s329 = scalar_lea.sflag [#allocation3], 1
    %330 = vsyncpa %s329, 1

</llo_original>
